<compile_context>
chip_gen: v5e
topology: v5e:2x2
jax: 0.10.0
libtpu: 0.0.40
codegen_flags: <defaults>
</compile_context>

<pallas_src>
import functools
import math

import numpy as np
import jax
import jax.numpy as jnp
from jax import lax
from jax.experimental import pallas as pl
from jax.experimental.pallas import tpu as pltpu

F_BINS = 140          # bpm_range = arange(40, 180) -> 140 frequency bins
F_PAD = 256           # 140 padded to lane-aligned 256 (2 x 128 lanes)
FS = 30               # sampling rate used by the module
STD = 1.0             # gaussian std for the label distribution


# ---------------------------------------------------------------------------
# cached, call-invariant constants (numpy -> device once; keyed on T)
# ---------------------------------------------------------------------------
@functools.lru_cache(maxsize=16)
def _dft_basis(T: int):
    """(T, 2*F_PAD) f32 basis with the Hann window folded in.

    columns [0:140]   = hann[t] * sin(2*pi*t/T * k_f)
    columns [256:396] = hann[t] * cos(2*pi*t/T * k_f)
    other columns     = 0 (lane padding)
    """
    bpm = np.arange(40, 180, dtype=np.float64)
    k = (bpm / 60.0) / (FS / T)
    theta = 2.0 * np.pi * np.arange(T, dtype=np.float64) / T
    arg = np.outer(theta, k)                                   # (T, 140)
    hann = np.hanning(T)[:, None]                              # (T, 1)
    basis = np.zeros((T, 2 * F_PAD), dtype=np.float32)
    basis[:, :F_BINS] = (hann * np.sin(arg)).astype(np.float32)
    basis[:, F_PAD:F_PAD + F_BINS] = (hann * np.cos(arg)).astype(np.float32)
    return jnp.asarray(basis)


@functools.lru_cache(maxsize=1)
def _label_tables():
    """Gaussian label-distribution tables indexed by the integer hr class.

    Reproduces the reference's KLDivLoss(log_target=True) quirk exactly:
      pointwise = exp(target) * (target - log_softmax)
    with target = max(gauss, 1e-15).
      w_table[j, i] = exp(target_ji)  (i < 140, else 0)
      a_table[j]    = sum_i exp(target_ji) * target_ji   (constant term)
    """
    i = np.arange(F_BINS, dtype=np.float64)[None, :]
    j = np.arange(F_BINS, dtype=np.float64)[:, None]
    gauss = np.exp(-(i - j) ** 2 / (2.0 * STD * STD)) / (math.sqrt(2.0 * math.pi) * STD)
    tgt = np.maximum(gauss, 1e-15)
    w = np.exp(tgt)
    a = np.sum(w * tgt, axis=1)
    w_pad = np.zeros((F_BINS, F_PAD), dtype=np.float32)
    w_pad[:, :F_BINS] = w.astype(np.float32)
    return jnp.asarray(w_pad), jnp.asarray(a.astype(np.float32))


# ---------------------------------------------------------------------------
# kernel: one tile of TILE_B rows -> (1, 1, 128) partial-loss row
#   lane 0 = sum(1 - pearson), lane 1 = sum(cross-entropy), lane 2 = sum(KL')
#   (KL' is the log_softmax-dependent part; the constant part is added in the
#    wrapper.)
# ---------------------------------------------------------------------------
def _loss_kernel(pred_ref, targ_ref, basis_ref, w_ref, hr_ref, out_ref,
                 *, total_rows):
    pred = pred_ref[...]                                       # (TILE_B, T) f32
    targ = targ_ref[...]                                       # (TILE_B, T) f32
    tile_b, T = pred.shape
    n = jnp.float32(T)

    # valid-row mask for batch-padding rows (padded rows are finite but masked)
    row = pl.program_id(0) * tile_b + lax.broadcasted_iota(jnp.int32, (tile_b, 1), 0)
    valid = (row < total_rows).astype(jnp.float32)             # (TILE_B, 1)

    # ---- negative Pearson loss: Pearson is invariant to the reference's
    #      standardization, so use the raw moments directly -------------------
    sum_x = jnp.sum(pred, axis=-1, keepdims=True)
    sum_y = jnp.sum(targ, axis=-1, keepdims=True)
    sum_xy = jnp.sum(pred * targ, axis=-1, keepdims=True)
    sum_x2 = jnp.sum(pred * pred, axis=-1, keepdims=True)
    sum_y2 = jnp.sum(targ * targ, axis=-1, keepdims=True)
    num = n * sum_xy - sum_x * sum_y
    den = (n * sum_x2 - sum_x * sum_x) * (n * sum_y2 - sum_y * sum_y)
    pearson = num * lax.rsqrt(den)
    t_sum = jnp.sum((1.0 - pearson) * valid)

    # ---- DFT power spectrum: single fused f32 MXU matmul (hann folded in) ---
    proj = jnp.dot(pred, basis_ref[...],
                   preferred_element_type=jnp.float32)         # (TILE_B, 2*F_PAD)
    s = proj[:, :F_PAD]                                        # 128-aligned splits
    c = proj[:, F_PAD:]
    ca = s * s + c * c                                         # zero in pad lanes
    ca = ca * (1.0 / jnp.sum(ca, axis=-1, keepdims=True))      # row-normalized

    lane = lax.broadcasted_iota(jnp.int32, ca.shape, 1)        # (TILE_B, F_PAD)
    in_band = lane < F_BINS

    # ---- cross-entropy with average_hr as the class index -------------------
    # ca in [0,1] -> logsumexp needs no max-shift; mask the 116 pad lanes.
    sum_exp = jnp.sum(jnp.where(in_band, jnp.exp(ca), 0.0), axis=-1, keepdims=True)
    lse = jnp.log(sum_exp)
    onehot = (lane == hr_ref[...]).astype(jnp.float32)         # hr_ref (TILE_B,1) i32
    logit_hr = jnp.sum(ca * onehot, axis=-1, keepdims=True)
    ce_sum = jnp.sum((lse - logit_hr) * valid)

    # ---- label-distribution loss (KLDivLoss log_target=True quirk kept) -----
    # pointwise = exp(t) * (t - log_softmax); only the -exp(t)*log_softmax part
    # is batch-data dependent; the exp(t)*t part is added in the wrapper.
    log_sm = ca - lse                                          # log_softmax(ca)
    w_dot = jnp.sum(w_ref[...] * log_sm, axis=-1, keepdims=True)
    kl_sum = jnp.sum((-w_dot) * (1.0 / F_BINS) * valid)        # batchmean over 140

    # lane-dense per-tile partials
    lane_o = lax.broadcasted_iota(jnp.int32, (1, 1, 128), 2)
    out_ref[...] = (jnp.where(lane_o == 0, t_sum, 0.0)
                    + jnp.where(lane_o == 1, ce_sum, 0.0)
                    + jnp.where(lane_o == 2, kl_sum, 0.0)).astype(jnp.float32)


# ---------------------------------------------------------------------------
# wrapper
# ---------------------------------------------------------------------------
def curriculum_loss(epoch, predicted_rppg, target_ppg, average_hr):
    pred = jnp.asarray(predicted_rppg, jnp.float32)
    targ = jnp.asarray(target_ppg, jnp.float32)
    if pred.ndim == 1:
        pred = pred[None, :]
        targ = targ[None, :]
    B, T = pred.shape

    # curriculum schedule (epoch is static python glue -> applied in wrapper)
    if epoch > 25:
        alpha, beta = 0.05, 2.0
    else:
        alpha = 0.1 * math.pow(0.5, epoch / 25.0)
        beta = 1.0 * math.pow(2.0, epoch / 25.0)

    basis = _dft_basis(T)                                      # (T, 2*F_PAD) f32
    w_table, a_table = _label_tables()                         # (140, F_PAD), (140,)

    # gaussian targets are pure functions of int(hr): gather precomputed rows
    hr_idx = jnp.reshape(jnp.asarray(average_hr), (-1,))[:B].astype(jnp.int32)
    w = w_table[hr_idx]                                        # (B, F_PAD) f32
    hr_col = hr_idx[:, None]                                   # (B, 1)     i32
    # constant part of the KL term: sum_b sum_i exp(t_bi) * t_bi / 140
    kl_const = jnp.sum(a_table[hr_idx]) * (1.0 / F_BINS)

    # batch tiling: single tile for small B, 128-row tiles (masked pad) else
    if B > 128:
        tile_b = 128
        b_pad = ((B + tile_b - 1) // tile_b) * tile_b
    else:
        tile_b = B
        b_pad = B
    num_tiles = b_pad // tile_b
    if b_pad != B:
        # pad with a non-degenerate ramp so padded rows stay finite
        # (their contributions are zeroed by the `valid` mask in the kernel)
        ramp = jnp.broadcast_to(
            (jnp.arange(T, dtype=jnp.float32) / jnp.float32(T))[None, :],
            (b_pad - B, T))
        pred = jnp.concatenate([pred, ramp], axis=0)
        targ = jnp.concatenate([targ, ramp], axis=0)
        w = jnp.concatenate(
            [w, jnp.broadcast_to(w_table[0][None, :], (b_pad - B, F_PAD))], axis=0)
        hr_col = jnp.concatenate(
            [hr_col, jnp.zeros((b_pad - B, 1), jnp.int32)], axis=0)

    # explicit VMEM budget for this tile size (double-buffered inputs + temps)
    est = (2 * 2 * tile_b * T * 4            # pred + targ
           + 2 * T * (2 * F_PAD) * 4         # f32 basis
           + 2 * tile_b * F_PAD * 4          # gaussian weights
           + 2 * tile_b * 4                  # hr class index
           + 2 * 128 * 4                     # partial-loss output
           + 6 * tile_b * (2 * F_PAD) * 4)   # matmul result + elementwise temps
    vmem_limit = int(min(max(2 * est, 8 * 1024 * 1024), 100 * 1024 * 1024))

    kernel = functools.partial(_loss_kernel, total_rows=B)
    partials = pl.pallas_call(
        kernel,
        out_shape=jax.ShapeDtypeStruct((num_tiles, 1, 128), jnp.float32),
        grid=(num_tiles,),
        in_specs=[
            pl.BlockSpec((tile_b, T), lambda i: (i, 0)),       # predicted_rppg
            pl.BlockSpec((tile_b, T), lambda i: (i, 0)),       # target_ppg
            pl.BlockSpec((T, 2 * F_PAD), lambda i: (0, 0)),    # fused DFT basis
            pl.BlockSpec((tile_b, F_PAD), lambda i: (i, 0)),   # exp(target) weights
            pl.BlockSpec((tile_b, 1), lambda i: (i, 0)),       # hr class index
        ],
        out_specs=pl.BlockSpec((1, 1, 128), lambda i: (i, 0, 0)),
        compiler_params=pltpu.CompilerParams(
            dimension_semantics=("parallel",),
            vmem_limit_bytes=vmem_limit),
    )(pred, targ, basis, w, hr_col)

    partials = partials[:, 0, :]                               # (num_tiles, 128)
    temporal_loss = jnp.sum(partials[:, 0]) / B
    cross_entropy = jnp.sum(partials[:, 1]) / B
    label_dist = (jnp.sum(partials[:, 2]) + kl_const) / B
    return alpha * temporal_loss + beta * (cross_entropy + label_dist)


if __name__ == "__main__":
    key = jax.random.PRNGKey(0)
    k1, k2, k3 = jax.random.split(key, 3)
    B, T = 2, 128
    predicted_rppg = jax.random.normal(k1, (B, T), dtype=jnp.float32)
    target_ppg = jax.random.normal(k2, (B, T), dtype=jnp.float32)
    # average_hr is used as the class index into the 140 bpm bins (hr_bpm - 40)
    average_hr = jax.random.randint(k3, (B,), 20, 120).astype(jnp.float32)

    loss = curriculum_loss(epoch=10,
                           predicted_rppg=predicted_rppg,
                           target_ppg=target_ppg,
                           average_hr=average_hr)
    jax.block_until_ready(loss)
    print("KERNEL_OK")
</pallas_src>

<mosaic_0001>
module attributes {stable_mosaic.version = 11 : i64} {
  func.func @_loss_kernel(%arg0: i32, %arg1: memref<2x128xf32, #tpu.memory_space<vmem>>, %arg2: memref<2x128xf32, #tpu.memory_space<vmem>>, %arg3: memref<128x512xf32, #tpu.memory_space<vmem>>, %arg4: memref<2x256xf32, #tpu.memory_space<vmem>>, %arg5: memref<2x1xi32, #tpu.memory_space<vmem>>, %arg6: memref<1x1x128xf32, #tpu.memory_space<vmem>>) attributes {dimension_semantics = [#tpu.dimension_semantics<parallel>], iteration_bounds = array<i64: 1>, scalar_prefetch = 0 : i64, scratch_operands = 0 : i64, tpu.core_type = #tpu.core_type<tc>, window_params = [{transform_indices = @transform_0, window_bounds = array<i64: 2, 128>}, {transform_indices = @transform_1, window_bounds = array<i64: 2, 128>}, {pipeline_mode = #tpu.pipeline_mode<synchronous>, transform_indices = @transform_2, window_bounds = array<i64: 128, 512>}, {transform_indices = @transform_3, window_bounds = array<i64: 2, 256>}, {transform_indices = @transform_4, window_bounds = array<i64: 2, 1>}, {transform_indices = @transform_5, window_bounds = array<i64: 1, 1, 128>}]} {
    %c0 = arith.constant 0 : index
    %c0_0 = arith.constant 0 : index
    %0 = vector.load %arg1[%c0, %c0_0] : memref<2x128xf32, #tpu.memory_space<vmem>>, vector<2x128xf32>
    %c0_1 = arith.constant 0 : index
    %c0_2 = arith.constant 0 : index
    %1 = vector.load %arg2[%c0_1, %c0_2] : memref<2x128xf32, #tpu.memory_space<vmem>>, vector<2x128xf32>
    %c2_i32 = arith.constant 2 : i32
    %2 = arith.muli %arg0, %c2_i32 : i32
    %3 = tpu.iota {dimensions = array<i32: 0>} : vector<2x1xi32>
    %4 = vector.broadcast %2 : i32 to vector<2x1xi32>
    %5 = arith.addi %4, %3 : vector<2x1xi32>
    %c2_i32_3 = arith.constant 2 : i32
    %6 = vector.broadcast %c2_i32_3 : i32 to vector<2x1xi32>
    %7 = arith.cmpi slt, %5, %6 : vector<2x1xi32>
    %8 = arith.extui %7 : vector<2x1xi1> to vector<2x1xi32>
    %9 = arith.sitofp %8 : vector<2x1xi32> to vector<2x1xf32>
    %cst = arith.constant dense<0.000000e+00> : vector<2xf32>
    %10 = vector.multi_reduction <add>, %0, %cst [1] : vector<2x128xf32> to vector<2xf32>
    %11 = vector.shape_cast %10 : vector<2xf32> to vector<2x1xf32>
    %cst_4 = arith.constant dense<0.000000e+00> : vector<2xf32>
    %12 = vector.multi_reduction <add>, %1, %cst_4 [1] : vector<2x128xf32> to vector<2xf32>
    %13 = vector.shape_cast %12 : vector<2xf32> to vector<2x1xf32>
    %14 = arith.mulf %0, %1 : vector<2x128xf32>
    %cst_5 = arith.constant dense<0.000000e+00> : vector<2xf32>
    %15 = vector.multi_reduction <add>, %14, %cst_5 [1] : vector<2x128xf32> to vector<2xf32>
    %16 = vector.shape_cast %15 : vector<2xf32> to vector<2x1xf32>
    %17 = arith.mulf %0, %0 : vector<2x128xf32>
    %cst_6 = arith.constant dense<0.000000e+00> : vector<2xf32>
    %18 = vector.multi_reduction <add>, %17, %cst_6 [1] : vector<2x128xf32> to vector<2xf32>
    %19 = vector.shape_cast %18 : vector<2xf32> to vector<2x1xf32>
    %20 = arith.mulf %1, %1 : vector<2x128xf32>
    %cst_7 = arith.constant dense<0.000000e+00> : vector<2xf32>
    %21 = vector.multi_reduction <add>, %20, %cst_7 [1] : vector<2x128xf32> to vector<2xf32>
    %22 = vector.shape_cast %21 : vector<2xf32> to vector<2x1xf32>
    %cst_8 = arith.constant 1.280000e+02 : f32
    %23 = vector.broadcast %cst_8 : f32 to vector<2x1xf32>
    %24 = arith.mulf %23, %16 : vector<2x1xf32>
    %25 = arith.mulf %11, %13 : vector<2x1xf32>
    %26 = arith.subf %24, %25 : vector<2x1xf32>
    %cst_9 = arith.constant 1.280000e+02 : f32
    %27 = vector.broadcast %cst_9 : f32 to vector<2x1xf32>
    %28 = arith.mulf %27, %19 : vector<2x1xf32>
    %29 = arith.mulf %11, %11 : vector<2x1xf32>
    %30 = arith.subf %28, %29 : vector<2x1xf32>
    %cst_10 = arith.constant 1.280000e+02 : f32
    %31 = vector.broadcast %cst_10 : f32 to vector<2x1xf32>
    %32 = arith.mulf %31, %22 : vector<2x1xf32>
    %33 = arith.mulf %13, %13 : vector<2x1xf32>
    %34 = arith.subf %32, %33 : vector<2x1xf32>
    %35 = arith.mulf %30, %34 : vector<2x1xf32>
    %36 = math.rsqrt %35 : vector<2x1xf32>
    %37 = arith.mulf %26, %36 : vector<2x1xf32>
    %cst_11 = arith.constant 1.000000e+00 : f32
    %38 = vector.broadcast %cst_11 : f32 to vector<2x1xf32>
    %39 = arith.subf %38, %37 : vector<2x1xf32>
    %40 = arith.mulf %39, %9 : vector<2x1xf32>
    %41 = vector.shape_cast %40 : vector<2x1xf32> to vector<1x2x1xf32>
    %cst_12 = arith.constant dense<0.000000e+00> : vector<1xf32>
    %42 = vector.multi_reduction <add>, %41, %cst_12 [1, 2] : vector<1x2x1xf32> to vector<1xf32>
    %43 = vector.shape_cast %42 : vector<1xf32> to vector<1x1x1xf32>
    %44 = vector.extract %43[0, 0, 0] : f32 from vector<1x1x1xf32>
    %c0_13 = arith.constant 0 : index
    %c0_14 = arith.constant 0 : index
    %45 = vector.load %arg3[%c0_13, %c0_14] : memref<128x512xf32, #tpu.memory_space<vmem>>, vector<128x512xf32>
    %cst_15 = arith.constant dense<0.000000e+00> : vector<2x512xf32>
    %46 = tpu.matmul %0, %45, %cst_15 {dimension_numbers = #tpu.dot_dimension_numbers<[1], [0], [0], [1], [0, 0, 1, 1], [], []>} : vector<2x128xf32>, vector<128x512xf32>, vector<2x512xf32> -> vector<2x512xf32>
    %47 = vector.extract_strided_slice %46 {offsets = [0, 0], sizes = [2, 256], strides = [1, 1]} : vector<2x512xf32> to vector<2x256xf32>
    %48 = vector.extract_strided_slice %46 {offsets = [0, 256], sizes = [2, 256], strides = [1, 1]} : vector<2x512xf32> to vector<2x256xf32>
    %49 = arith.mulf %47, %47 : vector<2x256xf32>
    %50 = arith.mulf %48, %48 : vector<2x256xf32>
    %51 = arith.addf %49, %50 : vector<2x256xf32>
    %cst_16 = arith.constant dense<0.000000e+00> : vector<2xf32>
    %52 = vector.multi_reduction <add>, %51, %cst_16 [1] : vector<2x256xf32> to vector<2xf32>
    %53 = vector.shape_cast %52 : vector<2xf32> to vector<2x1xf32>
    %cst_17 = arith.constant 1.000000e+00 : f32
    %54 = vector.broadcast %cst_17 : f32 to vector<2x1xf32>
    %55 = arith.divf %54, %53 : vector<2x1xf32>
    %56 = vector.broadcast %55 : vector<2x1xf32> to vector<2x256xf32>
    %57 = arith.mulf %51, %56 : vector<2x256xf32>
    %58 = tpu.iota {dimensions = array<i32: 1>} : vector<2x256xi32>
    %c140_i32 = arith.constant 140 : i32
    %59 = vector.broadcast %c140_i32 : i32 to vector<2x256xi32>
    %60 = arith.cmpi slt, %58, %59 : vector<2x256xi32>
    %61 = math.exp %57 : vector<2x256xf32>
    %cst_18 = arith.constant 0.000000e+00 : f32
    %62 = vector.broadcast %cst_18 : f32 to vector<2x256xf32>
    %63 = arith.select %60, %61, %62 : vector<2x256xi1>, vector<2x256xf32>
    %cst_19 = arith.constant dense<0.000000e+00> : vector<2xf32>
    %64 = vector.multi_reduction <add>, %63, %cst_19 [1] : vector<2x256xf32> to vector<2xf32>
    %65 = vector.shape_cast %64 : vector<2xf32> to vector<2x1xf32>
    %66 = math.log %65 : vector<2x1xf32>
    %c0_20 = arith.constant 0 : index
    %c0_21 = arith.constant 0 : index
    %67 = vector.load %arg5[%c0_20, %c0_21] : memref<2x1xi32, #tpu.memory_space<vmem>>, vector<2x1xi32>
    %68 = vector.broadcast %67 : vector<2x1xi32> to vector<2x256xi32>
    %69 = arith.cmpi eq, %58, %68 : vector<2x256xi32>
    %70 = arith.extui %69 : vector<2x256xi1> to vector<2x256xi32>
    %71 = arith.sitofp %70 : vector<2x256xi32> to vector<2x256xf32>
    %72 = arith.mulf %57, %71 : vector<2x256xf32>
    %cst_22 = arith.constant dense<0.000000e+00> : vector<2xf32>
    %73 = vector.multi_reduction <add>, %72, %cst_22 [1] : vector<2x256xf32> to vector<2xf32>
    %74 = vector.shape_cast %73 : vector<2xf32> to vector<2x1xf32>
    %75 = arith.subf %66, %74 : vector<2x1xf32>
    %76 = arith.mulf %75, %9 : vector<2x1xf32>
    %77 = vector.shape_cast %76 : vector<2x1xf32> to vector<1x2x1xf32>
    %cst_23 = arith.constant dense<0.000000e+00> : vector<1xf32>
    %78 = vector.multi_reduction <add>, %77, %cst_23 [1, 2] : vector<1x2x1xf32> to vector<1xf32>
    %79 = vector.shape_cast %78 : vector<1xf32> to vector<1x1x1xf32>
    %80 = vector.extract %79[0, 0, 0] : f32 from vector<1x1x1xf32>
    %81 = vector.broadcast %66 : vector<2x1xf32> to vector<2x256xf32>
    %82 = arith.subf %57, %81 : vector<2x256xf32>
    %c0_24 = arith.constant 0 : index
    %c0_25 = arith.constant 0 : index
    %83 = vector.load %arg4[%c0_24, %c0_25] : memref<2x256xf32, #tpu.memory_space<vmem>>, vector<2x256xf32>
    %84 = arith.mulf %83, %82 : vector<2x256xf32>
    %cst_26 = arith.constant dense<0.000000e+00> : vector<2xf32>
    %85 = vector.multi_reduction <add>, %84, %cst_26 [1] : vector<2x256xf32> to vector<2xf32>
    %86 = vector.shape_cast %85 : vector<2xf32> to vector<2x1xf32>
    %cst_27 = arith.constant 0.000000e+00 : f32
    %87 = vector.broadcast %cst_27 : f32 to vector<2x1xf32>
    %88 = arith.subf %87, %86 : vector<2x1xf32>
    %cst_28 = arith.constant 0.00714285718 : f32
    %89 = vector.broadcast %cst_28 : f32 to vector<2x1xf32>
    %90 = arith.mulf %88, %89 : vector<2x1xf32>
    %91 = arith.mulf %90, %9 : vector<2x1xf32>
    %92 = vector.shape_cast %91 : vector<2x1xf32> to vector<1x2x1xf32>
    %cst_29 = arith.constant dense<0.000000e+00> : vector<1xf32>
    %93 = vector.multi_reduction <add>, %92, %cst_29 [1, 2] : vector<1x2x1xf32> to vector<1xf32>
    %94 = vector.shape_cast %93 : vector<1xf32> to vector<1x1x1xf32>
    %95 = vector.extract %94[0, 0, 0] : f32 from vector<1x1x1xf32>
    %96 = tpu.iota {dimensions = array<i32: 2>} : vector<1x1x128xi32>
    %c0_i32 = arith.constant 0 : i32
    %97 = vector.broadcast %c0_i32 : i32 to vector<1x1x128xi32>
    %98 = arith.cmpi eq, %96, %97 : vector<1x1x128xi32>
    %cst_30 = arith.constant 0.000000e+00 : f32
    %99 = vector.broadcast %44 : f32 to vector<1x1x128xf32>
    %100 = vector.broadcast %cst_30 : f32 to vector<1x1x128xf32>
    %101 = arith.select %98, %99, %100 : vector<1x1x128xi1>, vector<1x1x128xf32>
    %c1_i32 = arith.constant 1 : i32
    %102 = vector.broadcast %c1_i32 : i32 to vector<1x1x128xi32>
    %103 = arith.cmpi eq, %96, %102 : vector<1x1x128xi32>
    %cst_31 = arith.constant 0.000000e+00 : f32
    %104 = vector.broadcast %80 : f32 to vector<1x1x128xf32>
    %105 = vector.broadcast %cst_31 : f32 to vector<1x1x128xf32>
    %106 = arith.select %103, %104, %105 : vector<1x1x128xi1>, vector<1x1x128xf32>
    %107 = arith.addf %101, %106 : vector<1x1x128xf32>
    %c2_i32_32 = arith.constant 2 : i32
    %108 = vector.broadcast %c2_i32_32 : i32 to vector<1x1x128xi32>
    %109 = arith.cmpi eq, %96, %108 : vector<1x1x128xi32>
    %cst_33 = arith.constant 0.000000e+00 : f32
    %110 = vector.broadcast %95 : f32 to vector<1x1x128xf32>
    %111 = vector.broadcast %cst_33 : f32 to vector<1x1x128xf32>
    %112 = arith.select %109, %110, %111 : vector<1x1x128xi1>, vector<1x1x128xf32>
    %113 = arith.addf %107, %112 : vector<1x1x128xf32>
    %c0_34 = arith.constant 0 : index
    %c0_35 = arith.constant 0 : index
    %c0_36 = arith.constant 0 : index
    %114 = vector.load %arg6[%c0_34, %c0_35, %c0_36] : memref<1x1x128xf32, #tpu.memory_space<vmem>>, vector<1x1x128xf32>
    tpu.vector_store %arg6[%c0_34, %c0_35, %c0_36], %113 {strides = array<i32>} : memref<1x1x128xf32, #tpu.memory_space<vmem>>, vector<1x1x128xf32>,
    return
  }
  func.func @transform_0(%arg0: i32) -> (i32, i32) {
    %c0_i32 = arith.constant 0 : i32
    %c0_i32_0 = arith.constant 0 : i32
    return %arg0, %c0_i32 : i32, i32
  }
  func.func @transform_1(%arg0: i32) -> (i32, i32) {
    %c0_i32 = arith.constant 0 : i32
    %c0_i32_0 = arith.constant 0 : i32
    return %arg0, %c0_i32 : i32, i32
  }
  func.func @transform_2(%arg0: i32) -> (i32, i32) {
    %c0_i32 = arith.constant 0 : i32
    %c0_i32_0 = arith.constant 0 : i32
    %c0_i32_1 = arith.constant 0 : i32
    return %c0_i32, %c0_i32_0 : i32, i32
  }
  func.func @transform_3(%arg0: i32) -> (i32, i32) {
    %c0_i32 = arith.constant 0 : i32
    %c0_i32_0 = arith.constant 0 : i32
    return %arg0, %c0_i32 : i32, i32
  }
  func.func @transform_4(%arg0: i32) -> (i32, i32) {
    %c0_i32 = arith.constant 0 : i32
    %c0_i32_0 = arith.constant 0 : i32
    return %arg0, %c0_i32 : i32, i32
  }
  func.func @transform_5(%arg0: i32) -> (i32, i32, i32) {
    %c0_i32 = arith.constant 0 : i32
    %c0_i32_0 = arith.constant 0 : i32
    %c0_i32_1 = arith.constant 0 : i32
    return %arg0, %c0_i32, %c0_i32_0 : i32, i32, i32
  }
}

</mosaic_0001>

<llo_original>
// kernel: tpu_custom_call.1
$region0: #{tpu_custom_call.1}
  #allocation0 [shape = 'u32[]', space=smem, size = 0x4, offset = 0x4, fixed_abs, tag = 'smem constant byte address 0x4 - core index']
  #allocation1 [shape = 'u32[72,128]{1,0:T(1,128)}', space=vmem, size = 0x9000, scoped, tag = 'internal scratch']
  %s0 = inlined_call_operand.vmem [shape: f32[2,128], index: 0, kind: input, shape index: {}]
  %s1 = inlined_call_operand.hbm [shape: f32[2,128], index: 1, kind: input, shape index: {}]
  %s2 = inlined_call_operand.hbm [shape: f32[128,512], index: 2, kind: input, shape index: {}]
  %s3 = inlined_call_operand.hbm [shape: f32[2,256], index: 3, kind: input, shape index: {}]
  %s4 = inlined_call_operand.vmem [shape: s32[2,1], index: 4, kind: input, shape index: {}]
  %s5 = inlined_call_operand.hbm [shape: f32[1,1,128], index: 5, kind: output, shape index: {}]
  %s6 = sld [smem:[#allocation0]]
  $region42: #{tpu_custom_call.1} parent=0
    _
  %s8 = ssub.s32 1, %s6
  %s9 = scalar_select 0, %s8, %s6
  $region1: #{tpu_custom_call.1} parent=0
    #allocation2 [shape = 'u8[1024]{0}', space=vmem, size = 0x400, scoped, tag = 'input window, operand 1, single buffered']
    #allocation3 [shape = 's32[1]{0}', space=sflag, size = 0x4, scoped, tag = 'scoped memory for tpu_custom_call.1']
    #allocation4 [shape = 's32[1]{0}', space=sflag, size = 0x4, scoped, tag = 'scoped memory for tpu_custom_call.1']
    #allocation5 [shape = 'u8[262144]{0}', space=vmem, size = 0x40000, scoped, tag = 'input window, operand 2, single buffered']
    #allocation6 [shape = 's32[1]{0}', space=sflag, size = 0x4, scoped, tag = 'scoped memory for tpu_custom_call.1']
    #allocation7 [shape = 'u8[2048]{0}', space=vmem, size = 0x800, scoped, tag = 'input window, operand 3, single buffered']
    #allocation8 [shape = 'u8[512]{0}', space=vmem, size = 0x400, scoped, tag = 'output window, operand 0, single buffered']
    %10 = vsyncpa [#allocation3], 0
    %11 = vsyncpa [#allocation6], 0
    %12 = vsyncpa [#allocation4], 0
    // Predicated region
    $region2: #{tpu_custom_call.1} parent=1 // pred_check
      _
    $region3: #{tpu_custom_call.1} parent=1 // pred_check_branch
      %14 = sbr.rel (0) target = $region5
    $region4: #{tpu_custom_call.1} parent=1 // pred_region
      _
    $region5: #{tpu_custom_call.1} parent=1 // pred_fallthru
      _
    // Predicated region
    $region6: #{tpu_custom_call.1} parent=1 // pred_check
      _
    $region7: #{tpu_custom_call.1} parent=1 // pred_check_branch
      %16 = sbr.rel (0) target = $region9
    $region8: #{tpu_custom_call.1} parent=1 // pred_region
      %18 = vsyncadd [#allocation3], 0
      %s20 = sshll.u32 %s1, 4
      %s21 = int_to_ptr.hbm [resolvable:$true] %s20
      %s22 = sshll.u32 [#allocation2], 4
      %s23 = int_to_ptr.vmem [resolvable:$true] %s22
      %25 = dma.hbm_to_vmem [thread:$0]  %s21, 32, %s23, [#allocation3]
    $region9: #{tpu_custom_call.1} parent=1 // pred_fallthru
      _
    // Predicated region
    $region10: #{tpu_custom_call.1} parent=1 // pred_check
      _
    $region11: #{tpu_custom_call.1} parent=1 // pred_check_branch
      %27 = sbr.rel (0) target = $region13
    $region12: #{tpu_custom_call.1} parent=1 // pred_region
      %29 = vsyncadd [#allocation6], 0
      %s30 = sshll.u32 %s2, 4
      %s31 = int_to_ptr.hbm [resolvable:$true] %s30
      %s32 = sshll.u32 [#allocation5], 4
      %s33 = int_to_ptr.vmem [resolvable:$true] %s32
      %38 = dma.hbm_to_vmem [thread:$0]  %s31, 8192, %s33, [#allocation6], 512, 512, 32
    $region13: #{tpu_custom_call.1} parent=1 // pred_fallthru
      _
    // Predicated region
    $region14: #{tpu_custom_call.1} parent=1 // pred_check
      _
    $region15: #{tpu_custom_call.1} parent=1 // pred_check_branch
      %40 = sbr.rel (0) target = $region17
    $region16: #{tpu_custom_call.1} parent=1 // pred_region
      %42 = vsyncadd [#allocation6], 0
      %s44 = sshll.u32 %s3, 4
      %s45 = int_to_ptr.hbm [resolvable:$true] %s44
      %s46 = sshll.u32 [#allocation7], 4
      %s47 = int_to_ptr.vmem [resolvable:$true] %s46
      %49 = dma.hbm_to_vmem [thread:$0]  %s45, 64, %s47, [#allocation6]
    $region17: #{tpu_custom_call.1} parent=1 // pred_fallthru
      _
    // Predicated region
    $region18: #{tpu_custom_call.1} parent=1 // pred_check
      _
    $region19: #{tpu_custom_call.1} parent=1 // pred_check_branch
      %51 = sbr.rel (0) target = $region21
    $region20: #{tpu_custom_call.1} parent=1 // pred_region
      _
    $region21: #{tpu_custom_call.1} parent=1 // pred_fallthru
      _
    // Predicated region
    $region22: #{tpu_custom_call.1} parent=1 // pred_check
      _
    $region23: #{tpu_custom_call.1} parent=1 // pred_check_branch
      %53 = sbr.rel (0) target = $region25
    $region24: #{tpu_custom_call.1} parent=1 // pred_region
      %55 = dma.done [#allocation3], 32
    $region25: #{tpu_custom_call.1} parent=1 // pred_fallthru
      _
    // Predicated region
    $region26: #{tpu_custom_call.1} parent=1 // pred_check
      _
    $region27: #{tpu_custom_call.1} parent=1 // pred_check_branch
      %57 = sbr.rel (0) target = $region29
    $region28: #{tpu_custom_call.1} parent=1 // pred_region
      %59 = dma.done [#allocation6], 8192
    $region29: #{tpu_custom_call.1} parent=1 // pred_fallthru
      _
    // Predicated region
    $region30: #{tpu_custom_call.1} parent=1 // pred_check
      _
    $region31: #{tpu_custom_call.1} parent=1 // pred_check_branch
      %61 = sbr.rel (0) target = $region33
    $region32: #{tpu_custom_call.1} parent=1 // pred_region
      %63 = dma.done [#allocation6], 64
    $region33: #{tpu_custom_call.1} parent=1 // pred_fallthru
      _
    %v64 = vld [vmem:[%s0] sm:$0x3]
    %v65 = vld [vmem:[#allocation2] sm:$0x3]
    %s66 = smul.u32 0, 2
    %v67 = vlaneseq
    %v68 = vshrl.u32 %v67, 7
    %v69 = vstv %s66
    %v70 = vadd.s32 %v69, %v68
    %vm71 = vcmp.lt.s32.totalorder %v70, 2
    %v72 = vsel %vm71, 1, 0
    %v73 = vcvt.s32.f32 %v72
    %vm74 = vcmask 1041408
    %v75 = vsel %vm74, %v64, 0.0
    %76 = vadd.xlane.f32.xlu0 %v75
    %v77 = vpop.xlane.xlu0 %76
    %v78 = vsel %vm74, %v65, 0.0
    %79 = vadd.xlane.f32.xlu0 %v78
    %v80 = vpop.xlane.xlu0 %79
    %v81 = vmul.f32 %v64, %v65
    %v82 = vsel %vm74, %v81, 0.0
    %83 = vadd.xlane.f32.xlu0 %v82
    %v84 = vpop.xlane.xlu0 %83
    %v85 = vmul.f32 %v64, %v64
    %v86 = vsel %vm74, %v85, 0.0
    %87 = vadd.xlane.f32.xlu0 %v86
    %v88 = vpop.xlane.xlu0 %87
    %v89 = vmul.f32 %v65, %v65
    %v90 = vsel %vm74, %v89, 0.0
    %91 = vadd.xlane.f32.xlu0 %v90
    %v92 = vpop.xlane.xlu0 %91
    %v93 = vmul.f32 %v84, 128.0
    %v94 = vmul.f32 %v77, %v80
    %v95 = vsub.f32 %v93, %v94
    %v96 = vmul.f32 %v88, 128.0
    %v97 = vmul.f32 %v77, %v77
    %v98 = vsub.f32 %v96, %v97
    %v99 = vmul.f32 %v92, 128.0
    %v100 = vmul.f32 %v80, %v80
    %v101 = vsub.f32 %v99, %v100
    %v102 = vmul.f32 %v98, %v101
    %v103 = vrsqrt.pop %v102
    %v104 = vmul.f32 %v103, %v102
    %v105 = vmul.f32 %v104, %v103
    %v106 = vmul.f32 0.5, %v105
    %v107 = vsub.f32 1.5, %v106
    %v108 = vmul.f32 %v103, %v107
    %vm109 = vweird.f32 %v102
    %vm110 = vweird.f32 %v103
    %vm111 = vmor %vm109, %vm110
    %v112 = vsel %vm111, %v103, %v108
    %v113 = vmul.f32 %v95, %v112
    %v114 = vsub.f32 1.0, %v113
    %v115 = vmul.f32 %v114, %v73
    %vm116 = vcmask 1024
    %v117 = vsel %vm116, %v115, 0.0
    %118 = vadd.xlane.f32.xlu0 %v117
    %v119 = vpop.xlane.xlu0 %118
    %v120 = vrot.slane %v119, 4
    %v121 = vadd.f32 %v119, %v120
    %v122 = vrot.slane %v121, 2
    %v123 = vadd.f32 %v121, %v122
    %v124 = vrot.slane %v123, 1
    %v125 = vadd.f32 %v123, %v124
    %s126 = vtos %v125
    %v127 = vld [vmem:[#allocation5] sm:$0xff]
    %v128 = vld [vmem:[#allocation5 + $0x8] sm:$0xff]
    %v129 = vld [vmem:[#allocation5 + $0x10] sm:$0xff]
    %v130 = vld [vmem:[#allocation5 + $0x18] sm:$0xff]
    %v131 = vld [vmem:[#allocation5 + $0x20] sm:$0xff]
    %v132 = vld [vmem:[#allocation5 + $0x28] sm:$0xff]
    %v133 = vld [vmem:[#allocation5 + $0x30] sm:$0xff]
    %v134 = vld [vmem:[#allocation5 + $0x38] sm:$0xff]
    %v135 = vld [vmem:[#allocation5 + $0x40] sm:$0xff]
    %v136 = vld [vmem:[#allocation5 + $0x48] sm:$0xff]
    %v137 = vld [vmem:[#allocation5 + $0x50] sm:$0xff]
    %v138 = vld [vmem:[#allocation5 + $0x58] sm:$0xff]
    %v139 = vld [vmem:[#allocation5 + $0x60] sm:$0xff]
    %v140 = vld [vmem:[#allocation5 + $0x68] sm:$0xff]
    %v141 = vld [vmem:[#allocation5 + $0x70] sm:$0xff]
    %v142 = vld [vmem:[#allocation5 + $0x78] sm:$0xff]
    %v143 = vld [vmem:[#allocation5 + $0x80] sm:$0xff]
    %v144 = vld [vmem:[#allocation5 + $0x88] sm:$0xff]
    %v145 = vld [vmem:[#allocation5 + $0x90] sm:$0xff]
    %v146 = vld [vmem:[#allocation5 + $0x98] sm:$0xff]
    %v147 = vld [vmem:[#allocation5 + $0xa0] sm:$0xff]
    %v148 = vld [vmem:[#allocation5 + $0xa8] sm:$0xff]
    %v149 = vld [vmem:[#allocation5 + $0xb0] sm:$0xff]
    %v150 = vld [vmem:[#allocation5 + $0xb8] sm:$0xff]
    %v151 = vld [vmem:[#allocation5 + $0xc0] sm:$0xff]
    %v152 = vld [vmem:[#allocation5 + $0xc8] sm:$0xff]
    %v153 = vld [vmem:[#allocation5 + $0xd0] sm:$0xff]
    %v154 = vld [vmem:[#allocation5 + $0xd8] sm:$0xff]
    %v155 = vld [vmem:[#allocation5 + $0xe0] sm:$0xff]
    %v156 = vld [vmem:[#allocation5 + $0xe8] sm:$0xff]
    %v157 = vld [vmem:[#allocation5 + $0xf0] sm:$0xff]
    %v158 = vld [vmem:[#allocation5 + $0xf8] sm:$0xff]
    %v159 = vld [vmem:[#allocation5 + $0x100] sm:$0xff]
    %v160 = vld [vmem:[#allocation5 + $0x108] sm:$0xff]
    %v161 = vld [vmem:[#allocation5 + $0x110] sm:$0xff]
    %v162 = vld [vmem:[#allocation5 + $0x118] sm:$0xff]
    %v163 = vld [vmem:[#allocation5 + $0x120] sm:$0xff]
    %v164 = vld [vmem:[#allocation5 + $0x128] sm:$0xff]
    %v165 = vld [vmem:[#allocation5 + $0x130] sm:$0xff]
    %v166 = vld [vmem:[#allocation5 + $0x138] sm:$0xff]
    %v167 = vld [vmem:[#allocation5 + $0x140] sm:$0xff]
    %v168 = vld [vmem:[#allocation5 + $0x148] sm:$0xff]
    %v169 = vld [vmem:[#allocation5 + $0x150] sm:$0xff]
    %v170 = vld [vmem:[#allocation5 + $0x158] sm:$0xff]
    %v171 = vld [vmem:[#allocation5 + $0x160] sm:$0xff]
    %v172 = vld [vmem:[#allocation5 + $0x168] sm:$0xff]
    %v173 = vld [vmem:[#allocation5 + $0x170] sm:$0xff]
    %v174 = vld [vmem:[#allocation5 + $0x178] sm:$0xff]
    %v175 = vld [vmem:[#allocation5 + $0x180] sm:$0xff]
    %v176 = vld [vmem:[#allocation5 + $0x188] sm:$0xff]
    %v177 = vld [vmem:[#allocation5 + $0x190] sm:$0xff]
    %v178 = vld [vmem:[#allocation5 + $0x198] sm:$0xff]
    %v179 = vld [vmem:[#allocation5 + $0x1a0] sm:$0xff]
    %v180 = vld [vmem:[#allocation5 + $0x1a8] sm:$0xff]
    %v181 = vld [vmem:[#allocation5 + $0x1b0] sm:$0xff]
    %v182 = vld [vmem:[#allocation5 + $0x1b8] sm:$0xff]
    %v183 = vld [vmem:[#allocation5 + $0x1c0] sm:$0xff]
    %v184 = vld [vmem:[#allocation5 + $0x1c8] sm:$0xff]
    %v185 = vld [vmem:[#allocation5 + $0x1d0] sm:$0xff]
    %v186 = vld [vmem:[#allocation5 + $0x1d8] sm:$0xff]
    %v187 = vld [vmem:[#allocation5 + $0x1e0] sm:$0xff]
    %v188 = vld [vmem:[#allocation5 + $0x1e8] sm:$0xff]
    %v189 = vld [vmem:[#allocation5 + $0x1f0] sm:$0xff]
    %v190 = vld [vmem:[#allocation5 + $0x1f8] sm:$0xff]
    %191 = vmatpush.msra.mxu0 %v187
    %192 = vmatpush.msra.mxu0 %v183
    %193 = vmatpush.msra.mxu0 %v179
    %194 = vmatpush.msra.mxu0 %v175
    %195 = vmatpush.msra.mxu0 %v171
    %196 = vmatpush.msra.mxu0 %v167
    %197 = vmatpush.msra.mxu0 %v163
    %198 = vmatpush.msra.mxu0 %v159
    %199 = vmatpush.msra.mxu0 %v155
    %200 = vmatpush.msra.mxu0 %v151
    %201 = vmatpush.msra.mxu0 %v147
    %202 = vmatpush.msra.mxu0 %v143
    %203 = vmatpush.msra.mxu0 %v139
    %204 = vmatpush.msra.mxu0 %v135
    %205 = vmatpush.msra.mxu0 %v131
    %206 = vmatpush.msra.mxu0 %v127
    %207 = vmatmul.f32.gmra.mxu0 %v64
    %v208 = vpop.f32.mrf.mxu0
    %v209 = vadd.f32 0.0, %v208
    %210 = vdwg.mxu0
    %211 = vmatpush.msra.mxu0 %v188
    %212 = vmatpush.msra.mxu0 %v184
    %213 = vmatpush.msra.mxu0 %v180
    %214 = vmatpush.msra.mxu0 %v176
    %215 = vmatpush.msra.mxu0 %v172
    %216 = vmatpush.msra.mxu0 %v168
    %217 = vmatpush.msra.mxu0 %v164
    %218 = vmatpush.msra.mxu0 %v160
    %219 = vmatpush.msra.mxu0 %v156
    %220 = vmatpush.msra.mxu0 %v152
    %221 = vmatpush.msra.mxu0 %v148
    %222 = vmatpush.msra.mxu0 %v144
    %223 = vmatpush.msra.mxu0 %v140
    %224 = vmatpush.msra.mxu0 %v136
    %225 = vmatpush.msra.mxu0 %v132
    %226 = vmatpush.msra.mxu0 %v128
    %227 = vmatmul.f32.gmra.mxu0 %v64
    %v228 = vpop.f32.mrf.mxu0
    %v229 = vadd.f32 0.0, %v228
    %230 = vdwg.mxu0
    %231 = vmatpush.msra.mxu0 %v189
    %232 = vmatpush.msra.mxu0 %v185
    %233 = vmatpush.msra.mxu0 %v181
    %234 = vmatpush.msra.mxu0 %v177
    %235 = vmatpush.msra.mxu0 %v173
    %236 = vmatpush.msra.mxu0 %v169
    %237 = vmatpush.msra.mxu0 %v165
    %238 = vmatpush.msra.mxu0 %v161
    %239 = vmatpush.msra.mxu0 %v157
    %240 = vmatpush.msra.mxu0 %v153
    %241 = vmatpush.msra.mxu0 %v149
    %242 = vmatpush.msra.mxu0 %v145
    %243 = vmatpush.msra.mxu0 %v141
    %244 = vmatpush.msra.mxu0 %v137
    %245 = vmatpush.msra.mxu0 %v133
    %246 = vmatpush.msra.mxu0 %v129
    %247 = vmatmul.f32.gmra.mxu0 %v64
    %v248 = vpop.f32.mrf.mxu0
    %v249 = vadd.f32 0.0, %v248
    %250 = vdwg.mxu0
    %251 = vmatpush.msra.mxu0 %v190
    %252 = vmatpush.msra.mxu0 %v186
    %253 = vmatpush.msra.mxu0 %v182
    %254 = vmatpush.msra.mxu0 %v178
    %255 = vmatpush.msra.mxu0 %v174
    %256 = vmatpush.msra.mxu0 %v170
    %257 = vmatpush.msra.mxu0 %v166
    %258 = vmatpush.msra.mxu0 %v162
    %259 = vmatpush.msra.mxu0 %v158
    %260 = vmatpush.msra.mxu0 %v154
    %261 = vmatpush.msra.mxu0 %v150
    %262 = vmatpush.msra.mxu0 %v146
    %263 = vmatpush.msra.mxu0 %v142
    %264 = vmatpush.msra.mxu0 %v138
    %265 = vmatpush.msra.mxu0 %v134
    %266 = vmatpush.msra.mxu0 %v130
    %267 = vmatmul.f32.gmra.mxu0 %v64
    %v268 = vpop.f32.mrf.mxu0
    %v269 = vadd.f32 0.0, %v268
    %270 = vdwg.mxu0
    %v271 = vmul.f32 %v209, %v209
    %v272 = vmul.f32 %v229, %v229
    %v273 = vmul.f32 %v249, %v249
    %v274 = vmul.f32 %v269, %v269
    %v275 = vadd.f32 %v271, %v273
    %v276 = vadd.f32 %v272, %v274
    %v277 = vsel %vm74, %v275, 0.0
    %v278 = vsel %vm74, %v276, 0.0
    %v279 = vadd.f32 %v277, %v278
    %280 = vadd.xlane.f32.xlu0 %v279
    %v281 = vpop.xlane.xlu0 %280
    %v282 = vrcp.pop %v281
    %v283 = vmul.f32 %v281, %v282
    %v284 = vsub.f32 1.0, %v283
    %v285 = vmul.f32 %v282, %v284
    %v286 = vadd.f32 %v282, %v285
    %vm287 = vweird.f32 %v281
    %vm288 = vweird.f32 %v282
    %vm289 = vmor %vm287, %vm288
    %v290 = vsel %vm289, %v282, %v286
    %v291 = vand.u32 2147483647, %v281
    %vm292 = vcmp.eq.f32.partialorder %v291, 8.507059e+37
    %v293 = vand.u32 %v281, 2147483648
    %v294 = vor.u32 1.1754944e-38, %v293
    %v295 = vsel %vm292, %v294, %v290
    %v296 = vmul.f32 1.0, %v295
    %v297 = vmul.f32 %v275, %v296
    %v298 = vmul.f32 %v276, %v296
    %v299 = vlaneseq
    %v300 = vand.u32 %v299, 127
    %v301 = vadd.s32 %v300, 128
    %vm302 = vcmp.lt.s32.totalorder %v300, 140
    %vm303 = vcmp.lt.s32.totalorder %v301, 140
    %v304 = vmul.f32 %v297, 1.442695
    %v305 = vpow.pop %v304
    %v306 = vmul.f32 %v298, 1.442695
    %v307 = vpow.pop %v306
    %v308 = vsel %vm302, %v305, 0.0
    %v309 = vsel %vm303, %v307, 0.0
    %v310 = vsel %vm74, %v308, 0.0
    %v311 = vsel %vm74, %v309, 0.0
    %v312 = vadd.f32 %v310, %v311
    %313 = vadd.xlane.f32.xlu0 %v312
    %v314 = vpop.xlane.xlu0 %313
    %v315 = vlog2.pop %v314
    %v316 = vmul.f32 %v315, 0.6931472
    %v317 = vld [vmem:[%s4] sm:$0x3]
    %318 = vset.pattern.permute.xlu0 0
    %319 = vperm.xlu0 %318, %v317
    %v320 = vpop.permute.xlu0 %319
    %vm321 = vcmp.eq.s32.totalorder %v300, %v320
    %vm322 = vcmp.eq.s32.totalorder %v301, %v320
    %v323 = vsel %vm321, 1, 0
    %v324 = vsel %vm322, 1, 0
    %v325 = vcvt.s32.f32 %v323
    %v326 = vcvt.s32.f32 %v324
    %v327 = vmul.f32 %v297, %v325
    %v328 = vmul.f32 %v298, %v326
    %v329 = vsel %vm74, %v327, 0.0
    %v330 = vsel %vm74, %v328, 0.0
    %v331 = vadd.f32 %v329, %v330
    %332 = vadd.xlane.f32.xlu0 %v331
    %v333 = vpop.xlane.xlu0 %332
    %v334 = vsub.f32 %v316, %v333
    %v335 = vmul.f32 %v334, %v73
    %v336 = vsel %vm116, %v335, 0.0
    %337 = vadd.xlane.f32.xlu0 %v336
    %v338 = vpop.xlane.xlu0 %337
    %v339 = vrot.slane %v338, 4
    %v340 = vadd.f32 %v338, %v339
    %v341 = vrot.slane %v340, 2
    %v342 = vadd.f32 %v340, %v341
    %v343 = vrot.slane %v342, 1
    %v344 = vadd.f32 %v342, %v343
    %s345 = vtos %v344
    %v346 = vsub.f32 %v297, %v316
    %v347 = vsub.f32 %v298, %v316
    %v348 = vld [vmem:[#allocation7] sm:$0xf]
    %v351 = vrot.slane %v347, 6
    %v352 = vsel %vm74, %v346, %v351
    %v354 = vmul.f32 %v348, %v352
    %356 = vst [vmem:[#allocation1] ss:$4 sm:$0xff] %v354
    %v357 = vld.sshfl [vmem:[#allocation1] sm:$0xff pattern:$0x73625140]
    %v358 = vld.sshfl [vmem:[#allocation1 + $0x8] sm:$0xff pattern:$0x73625140]
    %v361 = vsel %vm74, %v357, 0.0
    %v362 = vsel %vm74, %v358, 0.0
    %v363 = vadd.f32 %v361, %v362
    %364 = vadd.xlane.f32.xlu0 %v363
    %v365 = vpop.xlane.xlu0 %364
    %v366 = vsub.f32 0.0, %v365
    %v367 = vmul.f32 %v366, 0.007142857
    %v368 = vmul.f32 %v367, %v73
    %v369 = vsel %vm116, %v368, 0.0
    %370 = vadd.xlane.f32.xlu0 %v369
    %v371 = vpop.xlane.xlu0 %370
    %v372 = vrot.slane %v371, 4
    %v373 = vadd.f32 %v371, %v372
    %v374 = vrot.slane %v373, 2
    %v375 = vadd.f32 %v373, %v374
    %v376 = vrot.slane %v375, 1
    %v377 = vadd.f32 %v375, %v376
    %s378 = vtos %v377
    %vm379 = vcmp.eq.s32.totalorder %v300, 0
    %v380 = vstv %s126
    %v381 = vsel %vm379, %v380, 0.0
    %vm382 = vcmp.eq.s32.totalorder %v300, 1
    %v383 = vstv %s345
    %v384 = vsel %vm382, %v383, 0.0
    %v385 = vadd.f32 %v381, %v384
    %vm386 = vcmp.eq.s32.totalorder %v300, 2
    %v387 = vstv %s378
    %v388 = vsel %vm386, %v387, 0.0
    %v389 = vadd.f32 %v385, %v388
    %390 = vst [vmem:[#allocation8] sm:$0x1] %v389
    // Predicated region
    $region34: #{tpu_custom_call.1} parent=1 // pred_check
      _
    $region35: #{tpu_custom_call.1} parent=1 // pred_check_branch
      %392 = sbr.rel (0) target = $region37
    $region36: #{tpu_custom_call.1} parent=1 // pred_region
      %394 = vsyncadd [#allocation4], 0
      %s396 = sshll.u32 [#allocation8], 4
      %s397 = int_to_ptr.vmem [resolvable:$true] %s396
      %s398 = sshll.u32 %s5, 4
      %s399 = int_to_ptr.hbm [resolvable:$true] %s398
      %401 = dma.vmem_to_hbm [thread:$0]  %s397, 16, %s399, [#allocation4]
    $region37: #{tpu_custom_call.1} parent=1 // pred_fallthru
      _
    // Predicated region
    $region38: #{tpu_custom_call.1} parent=1 // pred_check
      _
    $region39: #{tpu_custom_call.1} parent=1 // pred_check_branch
      %403 = sbr.rel (0) target = $region41
    $region40: #{tpu_custom_call.1} parent=1 // pred_region
      %405 = dma.done [#allocation4], 16
    $region41: #{tpu_custom_call.1} parent=1 // pred_fallthru
      _
    %406 = vsyncpa [#allocation3], 1
    %407 = vsyncpa [#allocation6], 1
    %408 = vsyncpa [#allocation4], 1

</llo_original>
